<compile_context>
chip_gen: v7x
topology: tpu7x:2x2x1
jax: 0.10.0
libtpu: 0.0.40
codegen_flags: <defaults>
</compile_context>

<pallas_src>
import math
from functools import partial

import jax
import jax.numpy as jnp
from jax.experimental import pallas as pl
from jax.experimental.pallas import tpu as pltpu


def _round_up(x, m):
    return (x + m - 1) // m * m


def _tile_budget():
    """(row-tile cap, vmem_limit_bytes) keyed on physical VMEM per core."""
    try:
        kind = jax.devices()[0].device_kind.lower()
    except Exception:
        kind = ""
    if ("v5" in kind) or ("v6" in kind):
        return 1024, 64 * 1024 * 1024        # 128 MiB physical VMEM
    return 512, 48 * 1024 * 1024             # v7x (64 MiB) / unknown: conservative


def _ln_epilogue(y, prm, eps, out_dtype):
    """y: (tm, C_out) f32 pre-bias GEMM result; prm: (3, C_out) f32."""
    bias, gamma, beta = prm[0:1, :], prm[1:2, :], prm[2:3, :]
    y = y + bias
    mean = jnp.mean(y, axis=-1, keepdims=True)
    cent = y - mean
    var = jnp.mean(cent * cent, axis=-1, keepdims=True)
    inv = jax.lax.rsqrt(var + eps)
    return (cent * inv * gamma + beta).astype(out_dtype)


# ---------------------------------------------------------------------------
# Kernel A (common case): single K block, weight VMEM-resident, no scratch.
#   grid = (M_pad // tm,)
# ---------------------------------------------------------------------------
def _gemm_ln_single_kernel(p_ref, w_ref, prm_ref, o_ref, *, eps):
    y = jnp.dot(p_ref[...], w_ref[...], preferred_element_type=jnp.float32)
    o_ref[...] = _ln_epilogue(y, prm_ref[...].astype(jnp.float32), eps, o_ref.dtype)


# ---------------------------------------------------------------------------
# Kernel B (huge K): K-tiled reduction with f32 VMEM accumulator.
#   grid = (M_pad // tm, K_pad // tk)        (M parallel, K reduction)
# ---------------------------------------------------------------------------
def _gemm_ln_reduce_kernel(p_ref, w_ref, prm_ref, o_ref, acc_ref, *, eps):
    k = pl.program_id(1)

    @pl.when(k == 0)
    def _():
        acc_ref[...] = jnp.zeros_like(acc_ref)

    acc_ref[...] += jnp.dot(p_ref[...], w_ref[...],
                            preferred_element_type=jnp.float32)

    @pl.when(k == pl.num_programs(1) - 1)
    def _():
        o_ref[...] = _ln_epilogue(acc_ref[...], prm_ref[...].astype(jnp.float32),
                                  eps, o_ref.dtype)


def conv_ln_gemm(patches, w_mat, prm, *, tm, tk, eps, out_dtype, vmem_limit_bytes):
    """patches: (M_pad, K_pad) bf16, w_mat: (K_pad, C_out) bf16,
    prm: (3, C_out) f32 [bias; gamma; beta]  ->  (M_pad, C_out) out_dtype."""
    Mp, Kp = patches.shape
    C_out = w_mat.shape[1]
    grid_m = Mp // tm
    single_k = (tk == Kp)
    in_itm = jnp.dtype(patches.dtype).itemsize
    out_itm = jnp.dtype(out_dtype).itemsize

    if single_k:
        patches_kwargs = {}
        if grid_m > 2:
            # Mem-bound + short per-tile GEMM: triple-buffer the streaming side.
            patches_kwargs = dict(pipeline_mode=pl.Buffered(3))
        in_specs = [
            pl.BlockSpec((tm, Kp), lambda i: (i, 0), **patches_kwargs),   # patches
            pl.BlockSpec((Kp, C_out), lambda i: (0, 0)),                  # weight (resident)
            pl.BlockSpec((3, C_out), lambda i: (0, 0)),                   # bias/gamma/beta
        ]
        out_spec = pl.BlockSpec((tm, C_out), lambda i: (i, 0))
        grid = (grid_m,)
        scratch = []
        kernel = partial(_gemm_ln_single_kernel, eps=eps)
        semantics = ("parallel",)
        w_bytes = Kp * C_out * in_itm                    # fetched once
    else:
        in_specs = [
            pl.BlockSpec((tm, tk), lambda i, k: (i, k)),
            pl.BlockSpec((tk, C_out), lambda i, k: (k, 0)),
            pl.BlockSpec((3, C_out), lambda i, k: (0, 0)),
        ]
        out_spec = pl.BlockSpec((tm, C_out), lambda i, k: (i, 0))
        grid = (grid_m, Kp // tk)
        scratch = [pltpu.VMEM((tm, C_out), jnp.float32)]
        kernel = partial(_gemm_ln_reduce_kernel, eps=eps)
        semantics = ("parallel", "arbitrary")
        w_bytes = grid_m * Kp * C_out * in_itm           # re-fetched per row tile

    cost = pl.CostEstimate(
        flops=2 * Mp * Kp * C_out,
        transcendentals=Mp,                              # one rsqrt per token row
        bytes_accessed=Mp * Kp * in_itm + w_bytes + 3 * C_out * 4
                       + Mp * C_out * out_itm,
    )

    return pl.pallas_call(
        kernel,
        out_shape=jax.ShapeDtypeStruct((Mp, C_out), out_dtype),
        grid_spec=pltpu.PrefetchScalarGridSpec(
            num_scalar_prefetch=0,
            grid=grid,
            in_specs=in_specs,
            out_specs=out_spec,
            scratch_shapes=scratch,
        ),
        compiler_params=pltpu.CompilerParams(
            dimension_semantics=semantics,
            vmem_limit_bytes=vmem_limit_bytes,
        ),
        cost_estimate=cost,
    )(patches, w_mat, prm)


# ---------------------------------------------------------------------------
# DownSamples forward
# ---------------------------------------------------------------------------
def downsamples_forward(x, params, *, eps=1e-5, out_dtype=None):
    """x: (B, C_in, H, W) NCHW.  Returns (tokens (B, N, C_out), H_out, W_out)."""
    B, C_in, H, W = x.shape
    w = params["proj_w"]                       # (C_out, C_in, 3, 3), PyTorch layout
    C_out = w.shape[0]
    H_out = (H + 1) // 2
    W_out = (W + 1) // 2
    out_dtype = x.dtype if out_dtype is None else out_dtype

    # NHWC in bf16 (MXU operand dtype; accumulation stays f32 in-kernel) +
    # zero-pad of 1 pixel (conv padding=1).
    x_nhwc = jnp.transpose(x, (0, 2, 3, 1)).astype(jnp.bfloat16)
    xp = jnp.pad(x_nhwc, ((0, 0), (1, 1), (1, 1), (0, 0)))

    # im2col for the 3x3 / stride-2 conv: (B*H_out*W_out, 9*C_in), bf16.
    taps = []
    for kh in range(3):
        for kw in range(3):
            taps.append(jax.lax.slice(
                xp,
                (0, kh, kw, 0),
                (B, kh + 2 * (H_out - 1) + 1, kw + 2 * (W_out - 1) + 1, C_in),
                (1, 2, 2, 1)))
    patches = jnp.stack(taps, axis=3)                      # (B, Ho, Wo, 9, C_in)
    patches = patches.reshape(B * H_out * W_out, 9 * C_in)

    # Conv weight as a (9*C_in, C_out) GEMM operand, tap-major/c_in-minor to
    # match the patch layout above (cross-correlation, same as PyTorch Conv2d).
    w_mat = jnp.transpose(w, (2, 3, 1, 0)).reshape(9 * C_in, C_out)
    w_mat = w_mat.astype(jnp.bfloat16)

    # Tile sizing: lane-dense K (128 multiple), bf16-friendly tm (16 multiple),
    # VMEM-budgeted per chip generation.
    M = B * H_out * W_out
    K = 9 * C_in
    tm_cap, vmem_limit = _tile_budget()
    tm = min(tm_cap, _round_up(M, 16))
    Mp = _round_up(M, tm)
    if K <= 4096:
        Kp = _round_up(K, 128)
        tk = Kp                                  # single K block, weight resident
    else:
        tk = 1024                                # huge-K fallback (tk >= 512)
        Kp = _round_up(K, tk)

    patches = jnp.pad(patches, ((0, Mp - M), (0, Kp - K)))
    w_mat = jnp.pad(w_mat, ((0, Kp - K), (0, 0)))

    # Pack bias/gamma/beta into one (3, C_out) f32 operand (single DMA).
    prm = jnp.stack([params["proj_b"], params["ln_w"], params["ln_b"]]
                    ).astype(jnp.float32)

    out = conv_ln_gemm(patches, w_mat, prm, tm=tm, tk=tk, eps=eps,
                       out_dtype=out_dtype, vmem_limit_bytes=vmem_limit)
    out = out[:M].reshape(B, H_out * W_out, C_out)
    return out, H_out, W_out


# ---------------------------------------------------------------------------
# Deterministic parameter init (mirrors DownSamples._init_weights)
# ---------------------------------------------------------------------------
def init_params(key, in_channels, out_channels):
    # Conv2d: normal(0, sqrt(2 / fan_out)), fan_out = 3*3*out_channels, bias 0.
    fan_out = 3 * 3 * out_channels
    proj_w = math.sqrt(2.0 / fan_out) * jax.random.normal(
        key, (out_channels, in_channels, 3, 3), jnp.float32)
    return dict(
        proj_w=proj_w,
        proj_b=jnp.zeros((out_channels,), jnp.float32),
        ln_w=jnp.ones((out_channels,), jnp.float32),    # LayerNorm weight = 1
        ln_b=jnp.zeros((out_channels,), jnp.float32),   # LayerNorm bias = 0
    )


# ---------------------------------------------------------------------------
# Pure-JAX reference.  operand_dtype=bf16 emulates the kernel's MXU operand
# precision (accumulation / LayerNorm stay f32), giving a tight comparison.
# ---------------------------------------------------------------------------
def downsamples_reference(x, params, *, eps=1e-5, operand_dtype=jnp.float32):
    xq = x.astype(operand_dtype).astype(jnp.float32)
    wq = params["proj_w"].astype(operand_dtype).astype(jnp.float32)
    y = jax.lax.conv_general_dilated(
        xq, wq, window_strides=(2, 2), padding=((1, 1), (1, 1)),
        dimension_numbers=("NCHW", "OIHW", "NCHW"))
    y = y + params["proj_b"][None, :, None, None]
    B, C, H, W = y.shape
    y = y.reshape(B, C, H * W).transpose(0, 2, 1)           # (B, N, C)
    mean = y.mean(-1, keepdims=True)
    var = ((y - mean) ** 2).mean(-1, keepdims=True)
    y = (y - mean) / jnp.sqrt(var + eps)
    y = y * params["ln_w"] + params["ln_b"]
    return y, H, W


if __name__ == "__main__":
    key = jax.random.PRNGKey(0)
    kx, kp = jax.random.split(key)

    B, C_in, H, W = 2, 4, 16, 16
    C_out = 32

    x = jax.random.normal(kx, (B, C_in, H, W), jnp.float32)
    params = init_params(kp, C_in, C_out)

    out, H_out, W_out = downsamples_forward(x, params)
    out = jax.block_until_ready(out)

    # Compare against a reference whose conv operands are bf16-quantized like
    # the kernel's (f32 accumulation / LayerNorm in both).
    ref, H_ref, W_ref = downsamples_reference(x, params, operand_dtype=jnp.bfloat16)
    assert (H_out, W_out) == (H_ref, W_ref)
    assert out.shape == (B, H_out * W_out, C_out)
    assert jnp.allclose(out, ref, atol=2e-3, rtol=2e-3), "mismatch vs reference"

    print("KERNEL_OK")
</pallas_src>

<mosaic_0001>
module attributes {stable_mosaic.version = 11 : i64} {
  func.func @_gemm_ln_single_kernel(%arg0: i32, %arg1: memref<128x128xbf16, #tpu.memory_space<vmem>>, %arg2: memref<128x32xbf16, #tpu.memory_space<vmem>>, %arg3: memref<3x32xf32, #tpu.memory_space<vmem>>, %arg4: memref<128x32xf32, #tpu.memory_space<vmem>>) attributes {dimension_semantics = [#tpu.dimension_semantics<parallel>], iteration_bounds = array<i64: 1>, scalar_prefetch = 0 : i64, scratch_operands = 0 : i64, tpu.core_type = #tpu.core_type<tc>, window_params = [{transform_indices = @transform_0, window_bounds = array<i64: 128, 128>}, {pipeline_mode = #tpu.pipeline_mode<synchronous>, transform_indices = @transform_1, window_bounds = array<i64: 128, 32>}, {pipeline_mode = #tpu.pipeline_mode<synchronous>, transform_indices = @transform_2, window_bounds = array<i64: 3, 32>}, {transform_indices = @transform_3, window_bounds = array<i64: 128, 32>}]} {
    %c0 = arith.constant 0 : index
    %c0_0 = arith.constant 0 : index
    %0 = vector.load %arg1[%c0, %c0_0] : memref<128x128xbf16, #tpu.memory_space<vmem>>, vector<128x128xbf16>
    %c0_1 = arith.constant 0 : index
    %c0_2 = arith.constant 0 : index
    %1 = vector.load %arg2[%c0_1, %c0_2] : memref<128x32xbf16, #tpu.memory_space<vmem>>, vector<128x32xbf16>
    %cst = arith.constant dense<0.000000e+00> : vector<128x32xf32>
    %2 = tpu.matmul %0, %1, %cst {dimension_numbers = #tpu.dot_dimension_numbers<[1], [0], [0], [1], [0, 0, 1, 1], [], []>} : vector<128x128xbf16>, vector<128x32xbf16>, vector<128x32xf32> -> vector<128x32xf32>
    %c0_3 = arith.constant 0 : index
    %c0_4 = arith.constant 0 : index
    %3 = vector.load %arg3[%c0_3, %c0_4] : memref<3x32xf32, #tpu.memory_space<vmem>>, vector<3x32xf32>
    %4 = vector.extract_strided_slice %3 {offsets = [0, 0], sizes = [1, 32], strides = [1, 1]} : vector<3x32xf32> to vector<1x32xf32>
    %5 = vector.extract_strided_slice %3 {offsets = [1, 0], sizes = [1, 32], strides = [1, 1]} : vector<3x32xf32> to vector<1x32xf32>
    %6 = vector.extract_strided_slice %3 {offsets = [2, 0], sizes = [1, 32], strides = [1, 1]} : vector<3x32xf32> to vector<1x32xf32>
    %7 = vector.broadcast %4 : vector<1x32xf32> to vector<128x32xf32>
    %8 = arith.addf %2, %7 : vector<128x32xf32>
    %cst_5 = arith.constant dense<0.000000e+00> : vector<128xf32>
    %9 = vector.multi_reduction <add>, %8, %cst_5 [1] : vector<128x32xf32> to vector<128xf32>
    %10 = vector.shape_cast %9 : vector<128xf32> to vector<128x1xf32>
    %cst_6 = arith.constant 3.200000e+01 : f32
    %11 = vector.broadcast %cst_6 : f32 to vector<128x1xf32>
    %12 = arith.divf %10, %11 : vector<128x1xf32>
    %13 = vector.broadcast %12 : vector<128x1xf32> to vector<128x32xf32>
    %14 = arith.subf %8, %13 : vector<128x32xf32>
    %15 = arith.mulf %14, %14 : vector<128x32xf32>
    %cst_7 = arith.constant dense<0.000000e+00> : vector<128xf32>
    %16 = vector.multi_reduction <add>, %15, %cst_7 [1] : vector<128x32xf32> to vector<128xf32>
    %17 = vector.shape_cast %16 : vector<128xf32> to vector<128x1xf32>
    %cst_8 = arith.constant 3.200000e+01 : f32
    %18 = vector.broadcast %cst_8 : f32 to vector<128x1xf32>
    %19 = arith.divf %17, %18 : vector<128x1xf32>
    %cst_9 = arith.constant 9.99999974E-6 : f32
    %20 = vector.broadcast %cst_9 : f32 to vector<128x1xf32>
    %21 = arith.addf %19, %20 : vector<128x1xf32>
    %22 = math.rsqrt %21 : vector<128x1xf32>
    %23 = vector.broadcast %22 : vector<128x1xf32> to vector<128x32xf32>
    %24 = arith.mulf %14, %23 : vector<128x32xf32>
    %25 = vector.broadcast %5 : vector<1x32xf32> to vector<128x32xf32>
    %26 = arith.mulf %24, %25 : vector<128x32xf32>
    %27 = vector.broadcast %6 : vector<1x32xf32> to vector<128x32xf32>
    %28 = arith.addf %26, %27 : vector<128x32xf32>
    %c0_10 = arith.constant 0 : index
    %c0_11 = arith.constant 0 : index
    %29 = vector.load %arg4[%c0_10, %c0_11] : memref<128x32xf32, #tpu.memory_space<vmem>>, vector<128x32xf32>
    tpu.vector_store %arg4[%c0_10, %c0_11], %28 {strides = array<i32>} : memref<128x32xf32, #tpu.memory_space<vmem>>, vector<128x32xf32>,
    return
  }
  func.func @transform_0(%arg0: i32) -> (i32, i32) {
    %c0_i32 = arith.constant 0 : i32
    %c0_i32_0 = arith.constant 0 : i32
    return %arg0, %c0_i32 : i32, i32
  }
  func.func @transform_1(%arg0: i32) -> (i32, i32) {
    %c0_i32 = arith.constant 0 : i32
    %c0_i32_0 = arith.constant 0 : i32
    %c0_i32_1 = arith.constant 0 : i32
    return %c0_i32, %c0_i32_0 : i32, i32
  }
  func.func @transform_2(%arg0: i32) -> (i32, i32) {
    %c0_i32 = arith.constant 0 : i32
    %c0_i32_0 = arith.constant 0 : i32
    %c0_i32_1 = arith.constant 0 : i32
    return %c0_i32, %c0_i32_0 : i32, i32
  }
  func.func @transform_3(%arg0: i32) -> (i32, i32) {
    %c0_i32 = arith.constant 0 : i32
    %c0_i32_0 = arith.constant 0 : i32
    return %arg0, %c0_i32 : i32, i32
  }
}

</mosaic_0001>

<llo_original>
// kernel: tpu_custom_call.1
$region0: #{tpu_custom_call.1}
  #allocation0 [shape = 'u32[]', space=smem, size = 0x4, offset = 0x4, fixed_abs, tag = 'smem constant byte address 0x4 - core index']
  #allocation1 [shape = 'u32[144,128]{1,0:T(1,128)}', space=vmem, size = 0x12000, scoped, tag = 'internal scratch']
  %s0 = inlined_call_operand.vmem [shape: bf16[128,128], index: 0, kind: input, shape index: {}]
  %s1 = inlined_call_operand.vmem [shape: bf16[128,32], index: 1, kind: input, shape index: {}]
  %s2 = inlined_call_operand.vmem [shape: f32[3,32], index: 2, kind: input, shape index: {}]
  %s3 = inlined_call_operand.vmem [shape: f32[128,32], index: 3, kind: output, shape index: {}]
  %s4 = sld [smem:[#allocation0]]
  $region22: #{tpu_custom_call.1} parent=0
    _
  %s6 = ssub.s32 1, %s4
  %s7 = scalar_select 0, %s6, %s4
  // Predicated region
  $region2: #{tpu_custom_call.1} parent=0 // pred_check
    _
  $region3: #{tpu_custom_call.1} parent=0 // pred_check_branch
    %9 = sbr.rel (0) target = $region5
  $region4: #{tpu_custom_call.1} parent=0 // pred_region
    _
  $region5: #{tpu_custom_call.1} parent=0 // pred_fallthru
    _
  // Predicated region
  $region6: #{tpu_custom_call.1} parent=0 // pred_check
    _
  $region7: #{tpu_custom_call.1} parent=0 // pred_check_branch
    %11 = sbr.rel (0) target = $region9
  $region8: #{tpu_custom_call.1} parent=0 // pred_region
    _
  $region9: #{tpu_custom_call.1} parent=0 // pred_fallthru
    _
  // Predicated region
  $region10: #{tpu_custom_call.1} parent=0 // pred_check
    _
  $region11: #{tpu_custom_call.1} parent=0 // pred_check_branch
    %13 = sbr.rel (0) target = $region13
  $region12: #{tpu_custom_call.1} parent=0 // pred_region
    _
  $region13: #{tpu_custom_call.1} parent=0 // pred_fallthru
    _
  %v15 = vld [vmem:[%s0] sm:$0xf]
  %v16 = vld [vmem:[%s0 + $0x4] sm:$0xf]
  %v17 = vld [vmem:[%s0 + $0x8] sm:$0xf]
  %v18 = vld [vmem:[%s0 + $0xc] sm:$0xf]
  %v19 = vld [vmem:[%s0 + $0x10] sm:$0xf]
  %v20 = vld [vmem:[%s0 + $0x14] sm:$0xf]
  %v21 = vld [vmem:[%s0 + $0x18] sm:$0xf]
  %v22 = vld [vmem:[%s0 + $0x1c] sm:$0xf]
  %v23 = vld [vmem:[%s0 + $0x20] sm:$0xf]
  %v24 = vld [vmem:[%s0 + $0x24] sm:$0xf]
  %v25 = vld [vmem:[%s0 + $0x28] sm:$0xf]
  %v26 = vld [vmem:[%s0 + $0x2c] sm:$0xf]
  %v27 = vld [vmem:[%s0 + $0x30] sm:$0xf]
  %v28 = vld [vmem:[%s0 + $0x34] sm:$0xf]
  %v29 = vld [vmem:[%s0 + $0x38] sm:$0xf]
  %v30 = vld [vmem:[%s0 + $0x3c] sm:$0xf]
  %v31 = vld [vmem:[%s1] sm:$0xf]
  %v32 = vld [vmem:[%s1 + $0x4] sm:$0xf]
  %v33 = vld [vmem:[%s1 + $0x8] sm:$0xf]
  %v34 = vld [vmem:[%s1 + $0xc] sm:$0xf]
  %v35 = vld [vmem:[%s1 + $0x10] sm:$0xf]
  %v36 = vld [vmem:[%s1 + $0x14] sm:$0xf]
  %v37 = vld [vmem:[%s1 + $0x18] sm:$0xf]
  %v38 = vld [vmem:[%s1 + $0x1c] sm:$0xf]
  %v39 = vld [vmem:[%s1 + $0x20] sm:$0xf]
  %v40 = vld [vmem:[%s1 + $0x24] sm:$0xf]
  %v41 = vld [vmem:[%s1 + $0x28] sm:$0xf]
  %v42 = vld [vmem:[%s1 + $0x2c] sm:$0xf]
  %v43 = vld [vmem:[%s1 + $0x30] sm:$0xf]
  %v44 = vld [vmem:[%s1 + $0x34] sm:$0xf]
  %v45 = vld [vmem:[%s1 + $0x38] sm:$0xf]
  %v46 = vld [vmem:[%s1 + $0x3c] sm:$0xf]
  %v47 = vld [vmem:[%s2] sm:$0x7]
  %v48 = vlaneseq
  %v49 = vshrl.u32 %v48, 7
  %v50 = vsub.s32 0, %v49
  %v51 = vrot.slane %v47, %v50
  %v68 = vunpack.c.l.b16 %v15
  %v69 = vunpack.c.l.b16 %v16
  %v70 = vunpack.c.l.b16 %v17
  %v71 = vunpack.c.l.b16 %v18
  %v72 = vunpack.c.l.b16 %v19
  %v73 = vunpack.c.l.b16 %v20
  %v74 = vunpack.c.l.b16 %v21
  %v75 = vunpack.c.l.b16 %v22
  %v76 = vunpack.c.l.b16 %v23
  %v77 = vunpack.c.l.b16 %v24
  %v78 = vunpack.c.l.b16 %v25
  %v79 = vunpack.c.l.b16 %v26
  %v80 = vunpack.c.l.b16 %v27
  %v81 = vunpack.c.l.b16 %v28
  %v82 = vunpack.c.l.b16 %v29
  %v83 = vunpack.c.l.b16 %v30
  %v84 = vpack.c.b16 %v69, %v68
  %v85 = vpack.c.b16 %v71, %v70
  %v86 = vpack.c.b16 %v73, %v72
  %v87 = vpack.c.b16 %v75, %v74
  %v88 = vpack.c.b16 %v77, %v76
  %v89 = vpack.c.b16 %v79, %v78
  %v90 = vpack.c.b16 %v81, %v80
  %v91 = vpack.c.b16 %v83, %v82
  %v116 = vunpack.c.l.b16 %v31
  %v117 = vunpack.c.l.b16 %v32
  %v118 = vunpack.c.l.b16 %v33
  %v119 = vunpack.c.l.b16 %v34
  %v120 = vunpack.c.l.b16 %v35
  %v121 = vunpack.c.l.b16 %v36
  %v122 = vunpack.c.l.b16 %v37
  %v123 = vunpack.c.l.b16 %v38
  %v124 = vunpack.c.l.b16 %v39
  %v125 = vunpack.c.l.b16 %v40
  %v126 = vunpack.c.l.b16 %v41
  %v127 = vunpack.c.l.b16 %v42
  %v128 = vunpack.c.l.b16 %v43
  %v129 = vunpack.c.l.b16 %v44
  %v130 = vunpack.c.l.b16 %v45
  %v131 = vunpack.c.l.b16 %v46
  %v132 = vpack.c.b16 %v117, %v116
  %v133 = vpack.c.b16 %v119, %v118
  %v134 = vpack.c.b16 %v121, %v120
  %v135 = vpack.c.b16 %v123, %v122
  %v136 = vpack.c.b16 %v125, %v124
  %v137 = vpack.c.b16 %v127, %v126
  %v138 = vpack.c.b16 %v129, %v128
  %v139 = vpack.c.b16 %v131, %v130
  %148 = vmatprep.subr.bf16.mxu0 0
  %149 = vmatpush1.bf16.msra.mxu0 %v132
  %150 = vmatprep.subr.bf16.mxu0 0
  %151 = vmatpush1.bf16.msra.mxu0 %v133
  %152 = vmatprep.subr.bf16.mxu0 0
  %153 = vmatpush1.bf16.msra.mxu0 %v134
  %154 = vmatprep.subr.bf16.mxu0 0
  %155 = vmatpush1.bf16.msra.mxu0 %v135
  %156 = vmatprep.subr.bf16.mxu0 0
  %157 = vmatpush1.bf16.msra.mxu0 %v136
  %158 = vmatprep.subr.bf16.mxu0 0
  %159 = vmatpush1.bf16.msra.mxu0 %v137
  %160 = vmatprep.subr.bf16.mxu0 0
  %161 = vmatpush1.bf16.msra.mxu0 %v138
  %162 = vmatprep.subr.bf16.mxu0 0
  %163 = vmatpush1.bf16.msra.mxu0 %v139
  %164 = vmatprep.subr.bf16.mxu0 0
  %165 = vmatpush1.bf16.msra.mxu0 0
  %166 = vmatprep.subr.bf16.mxu0 0
  %167 = vmatpush1.bf16.msra.mxu0 0
  %168 = vmatprep.subr.bf16.mxu0 0
  %169 = vmatpush1.bf16.msra.mxu0 0
  %170 = vmatprep.subr.bf16.mxu0 0
  %171 = vmatpush1.bf16.msra.mxu0 0
  %172 = vmatprep.subr.bf16.mxu0 0
  %173 = vmatpush1.bf16.msra.mxu0 0
  %174 = vmatprep.subr.bf16.mxu0 0
  %175 = vmatpush1.bf16.msra.mxu0 0
  %176 = vmatprep.subr.bf16.mxu0 0
  %177 = vmatpush1.bf16.msra.mxu0 0
  %178 = vmatprep.subr.bf16.mxu0 0
  %179 = vmatpush1.bf16.msra.mxu0 0
  %180 = vmatprep.mubr.bf16.mxu0 0
  %181 = vmatmul.mubr.bf16.gmra.mrb[0].mxu0 %v84
  %v182 = vpop.f32.mrb[0].mxu0
  %v183 = vadd.f32 %v51, %v182
  %v184 = vpop.f32.mrb[0].mxu0
  %v185 = vpop.f32.mrb[0].mxu0
  %v186 = vadd.f32 %v51, %v185
  %v187 = vpop.f32.mrb[0].mxu0
  %188 = vmatprep.mubr.bf16.mxu0 0
  %189 = vmatmul.mubr.bf16.gmra.mrb[0].mxu0 %v85
  %v190 = vpop.f32.mrb[0].mxu0
  %v191 = vadd.f32 %v51, %v190
  %v192 = vpop.f32.mrb[0].mxu0
  %v193 = vpop.f32.mrb[0].mxu0
  %v194 = vadd.f32 %v51, %v193
  %v195 = vpop.f32.mrb[0].mxu0
  %196 = vmatprep.mubr.bf16.mxu0 0
  %197 = vmatmul.mubr.bf16.gmra.mrb[0].mxu0 %v86
  %v198 = vpop.f32.mrb[0].mxu0
  %v199 = vadd.f32 %v51, %v198
  %v200 = vpop.f32.mrb[0].mxu0
  %v201 = vpop.f32.mrb[0].mxu0
  %v202 = vadd.f32 %v51, %v201
  %v203 = vpop.f32.mrb[0].mxu0
  %204 = vmatprep.mubr.bf16.mxu0 0
  %205 = vmatmul.mubr.bf16.gmra.mrb[0].mxu0 %v87
  %v206 = vpop.f32.mrb[0].mxu0
  %v207 = vadd.f32 %v51, %v206
  %v208 = vpop.f32.mrb[0].mxu0
  %v209 = vpop.f32.mrb[0].mxu0
  %v210 = vadd.f32 %v51, %v209
  %v211 = vpop.f32.mrb[0].mxu0
  %212 = vmatprep.mubr.bf16.mxu0 0
  %213 = vmatmul.mubr.bf16.gmra.mrb[0].mxu0 %v88
  %v214 = vpop.f32.mrb[0].mxu0
  %v215 = vadd.f32 %v51, %v214
  %v216 = vpop.f32.mrb[0].mxu0
  %v217 = vpop.f32.mrb[0].mxu0
  %v218 = vadd.f32 %v51, %v217
  %v219 = vpop.f32.mrb[0].mxu0
  %220 = vmatprep.mubr.bf16.mxu0 0
  %221 = vmatmul.mubr.bf16.gmra.mrb[0].mxu0 %v89
  %v222 = vpop.f32.mrb[0].mxu0
  %v223 = vadd.f32 %v51, %v222
  %v224 = vpop.f32.mrb[0].mxu0
  %v225 = vpop.f32.mrb[0].mxu0
  %v226 = vadd.f32 %v51, %v225
  %v227 = vpop.f32.mrb[0].mxu0
  %228 = vmatprep.mubr.bf16.mxu0 0
  %229 = vmatmul.mubr.bf16.gmra.mrb[0].mxu0 %v90
  %v230 = vpop.f32.mrb[0].mxu0
  %v231 = vadd.f32 %v51, %v230
  %v232 = vpop.f32.mrb[0].mxu0
  %v233 = vpop.f32.mrb[0].mxu0
  %v234 = vadd.f32 %v51, %v233
  %v235 = vpop.f32.mrb[0].mxu0
  %236 = vmatprep.mubr.bf16.mxu0 0
  %237 = vmatmul.mubr.bf16.gmra.mrb[0].mxu0 %v91
  %v238 = vpop.f32.mrb[0].mxu0
  %v239 = vadd.f32 %v51, %v238
  %v240 = vpop.f32.mrb[0].mxu0
  %v241 = vpop.f32.mrb[0].mxu0
  %v242 = vadd.f32 %v51, %v241
  %v243 = vpop.f32.mrb[0].mxu0
  %244 = vdwg.mxu0
  %vm245 = vcmask 261120
  %v246 = vsel %vm245, %v183, 0.0
  %247 = vadd.xlane.f32.xlu0 %v246
  %v248 = vpop.xlane.xlu0 %247
  %v249 = vsel %vm245, %v186, 0.0
  %250 = vadd.xlane.f32.xlu0 %v249
  %v251 = vpop.xlane.xlu0 %250
  %v252 = vsel %vm245, %v191, 0.0
  %253 = vadd.xlane.f32.xlu0 %v252
  %v254 = vpop.xlane.xlu0 %253
  %v255 = vsel %vm245, %v194, 0.0
  %256 = vadd.xlane.f32.xlu0 %v255
  %v257 = vpop.xlane.xlu0 %256
  %v258 = vsel %vm245, %v199, 0.0
  %259 = vadd.xlane.f32.xlu0 %v258
  %v260 = vpop.xlane.xlu0 %259
  %v261 = vsel %vm245, %v202, 0.0
  %262 = vadd.xlane.f32.xlu0 %v261
  %v263 = vpop.xlane.xlu0 %262
  %v264 = vsel %vm245, %v207, 0.0
  %265 = vadd.xlane.f32.xlu0 %v264
  %v266 = vpop.xlane.xlu0 %265
  %v267 = vsel %vm245, %v210, 0.0
  %268 = vadd.xlane.f32.xlu0 %v267
  %v269 = vpop.xlane.xlu0 %268
  %v270 = vsel %vm245, %v215, 0.0
  %271 = vadd.xlane.f32.xlu0 %v270
  %v272 = vpop.xlane.xlu0 %271
  %v273 = vsel %vm245, %v218, 0.0
  %274 = vadd.xlane.f32.xlu0 %v273
  %v275 = vpop.xlane.xlu0 %274
  %v276 = vsel %vm245, %v223, 0.0
  %277 = vadd.xlane.f32.xlu0 %v276
  %v278 = vpop.xlane.xlu0 %277
  %v279 = vsel %vm245, %v226, 0.0
  %280 = vadd.xlane.f32.xlu0 %v279
  %v281 = vpop.xlane.xlu0 %280
  %v282 = vsel %vm245, %v231, 0.0
  %283 = vadd.xlane.f32.xlu0 %v282
  %v284 = vpop.xlane.xlu0 %283
  %v285 = vsel %vm245, %v234, 0.0
  %286 = vadd.xlane.f32.xlu0 %v285
  %v287 = vpop.xlane.xlu0 %286
  %v288 = vsel %vm245, %v239, 0.0
  %289 = vadd.xlane.f32.xlu0 %v288
  %v290 = vpop.xlane.xlu0 %289
  %v291 = vsel %vm245, %v242, 0.0
  %292 = vadd.xlane.f32.xlu0 %v291
  %v293 = vpop.xlane.xlu0 %292
  %v294 = vrcp.pop 32.0
  %v295 = vmul.f32 %v248, %v294
  %v296 = vmul.f32 %v251, %v294
  %v297 = vmul.f32 %v254, %v294
  %v298 = vmul.f32 %v257, %v294
  %v299 = vmul.f32 %v260, %v294
  %v300 = vmul.f32 %v263, %v294
  %v301 = vmul.f32 %v266, %v294
  %v302 = vmul.f32 %v269, %v294
  %v303 = vmul.f32 %v272, %v294
  %v304 = vmul.f32 %v275, %v294
  %v305 = vmul.f32 %v278, %v294
  %v306 = vmul.f32 %v281, %v294
  %v307 = vmul.f32 %v284, %v294
  %v308 = vmul.f32 %v287, %v294
  %v309 = vmul.f32 %v290, %v294
  %v310 = vmul.f32 %v293, %v294
  %v311 = vsub.f32 %v183, %v295
  %v312 = vsub.f32 %v186, %v296
  %v313 = vsub.f32 %v191, %v297
  %v314 = vsub.f32 %v194, %v298
  %v315 = vsub.f32 %v199, %v299
  %v316 = vsub.f32 %v202, %v300
  %v317 = vsub.f32 %v207, %v301
  %v318 = vsub.f32 %v210, %v302
  %v319 = vsub.f32 %v215, %v303
  %v320 = vsub.f32 %v218, %v304
  %v321 = vsub.f32 %v223, %v305
  %v322 = vsub.f32 %v226, %v306
  %v323 = vsub.f32 %v231, %v307
  %v324 = vsub.f32 %v234, %v308
  %v325 = vsub.f32 %v239, %v309
  %v326 = vsub.f32 %v242, %v310
  %v327 = vmul.f32 %v311, %v311
  %v328 = vmul.f32 %v312, %v312
  %v329 = vmul.f32 %v313, %v313
  %v330 = vmul.f32 %v314, %v314
  %v331 = vmul.f32 %v315, %v315
  %v332 = vmul.f32 %v316, %v316
  %v333 = vmul.f32 %v317, %v317
  %v334 = vmul.f32 %v318, %v318
  %v335 = vmul.f32 %v319, %v319
  %v336 = vmul.f32 %v320, %v320
  %v337 = vmul.f32 %v321, %v321
  %v338 = vmul.f32 %v322, %v322
  %v339 = vmul.f32 %v323, %v323
  %v340 = vmul.f32 %v324, %v324
  %v341 = vmul.f32 %v325, %v325
  %v342 = vmul.f32 %v326, %v326
  %v343 = vsel %vm245, %v327, 0.0
  %344 = vadd.xlane.f32.xlu0 %v343
  %v345 = vpop.xlane.xlu0 %344
  %v346 = vsel %vm245, %v328, 0.0
  %347 = vadd.xlane.f32.xlu0 %v346
  %v348 = vpop.xlane.xlu0 %347
  %v349 = vsel %vm245, %v329, 0.0
  %350 = vadd.xlane.f32.xlu0 %v349
  %v351 = vpop.xlane.xlu0 %350
  %v352 = vsel %vm245, %v330, 0.0
  %353 = vadd.xlane.f32.xlu0 %v352
  %v354 = vpop.xlane.xlu0 %353
  %v355 = vsel %vm245, %v331, 0.0
  %356 = vadd.xlane.f32.xlu0 %v355
  %v357 = vpop.xlane.xlu0 %356
  %v358 = vsel %vm245, %v332, 0.0
  %359 = vadd.xlane.f32.xlu0 %v358
  %v360 = vpop.xlane.xlu0 %359
  %v361 = vsel %vm245, %v333, 0.0
  %362 = vadd.xlane.f32.xlu0 %v361
  %v363 = vpop.xlane.xlu0 %362
  %v364 = vsel %vm245, %v334, 0.0
  %365 = vadd.xlane.f32.xlu0 %v364
  %v366 = vpop.xlane.xlu0 %365
  %v367 = vsel %vm245, %v335, 0.0
  %368 = vadd.xlane.f32.xlu0 %v367
  %v369 = vpop.xlane.xlu0 %368
  %v370 = vsel %vm245, %v336, 0.0
  %371 = vadd.xlane.f32.xlu0 %v370
  %v372 = vpop.xlane.xlu0 %371
  %v373 = vsel %vm245, %v337, 0.0
  %374 = vadd.xlane.f32.xlu0 %v373
  %v375 = vpop.xlane.xlu0 %374
  %v376 = vsel %vm245, %v338, 0.0
  %377 = vadd.xlane.f32.xlu0 %v376
  %v378 = vpop.xlane.xlu0 %377
  %v379 = vsel %vm245, %v339, 0.0
  %380 = vadd.xlane.f32.xlu0 %v379
  %v381 = vpop.xlane.xlu0 %380
  %v382 = vsel %vm245, %v340, 0.0
  %383 = vadd.xlane.f32.xlu0 %v382
  %v384 = vpop.xlane.xlu0 %383
  %v385 = vsel %vm245, %v341, 0.0
  %386 = vadd.xlane.f32.xlu0 %v385
  %v387 = vpop.xlane.xlu0 %386
  %v388 = vsel %vm245, %v342, 0.0
  %389 = vadd.xlane.f32.xlu0 %v388
  %v390 = vpop.xlane.xlu0 %389
  %v391 = vmul.f32 %v345, %v294
  %v392 = vmul.f32 %v348, %v294
  %v393 = vmul.f32 %v351, %v294
  %v394 = vmul.f32 %v354, %v294
  %v395 = vmul.f32 %v357, %v294
  %v396 = vmul.f32 %v360, %v294
  %v397 = vmul.f32 %v363, %v294
  %v398 = vmul.f32 %v366, %v294
  %v399 = vmul.f32 %v369, %v294
  %v400 = vmul.f32 %v372, %v294
  %v401 = vmul.f32 %v375, %v294
  %v402 = vmul.f32 %v378, %v294
  %v403 = vmul.f32 %v381, %v294
  %v404 = vmul.f32 %v384, %v294
  %v405 = vmul.f32 %v387, %v294
  %v406 = vmul.f32 %v390, %v294
  %v407 = vadd.f32 %v391, 1e-05
  %v408 = vadd.f32 %v392, 1e-05
  %v409 = vadd.f32 %v393, 1e-05
  %v410 = vadd.f32 %v394, 1e-05
  %v411 = vadd.f32 %v395, 1e-05
  %v412 = vadd.f32 %v396, 1e-05
  %v413 = vadd.f32 %v397, 1e-05
  %v414 = vadd.f32 %v398, 1e-05
  %v415 = vadd.f32 %v399, 1e-05
  %v416 = vadd.f32 %v400, 1e-05
  %v417 = vadd.f32 %v401, 1e-05
  %v418 = vadd.f32 %v402, 1e-05
  %v419 = vadd.f32 %v403, 1e-05
  %v420 = vadd.f32 %v404, 1e-05
  %v421 = vadd.f32 %v405, 1e-05
  %v422 = vadd.f32 %v406, 1e-05
  %v423 = vrsqrt.pop %v407
  %v424 = vrsqrt.pop %v408
  %v425 = vrsqrt.pop %v409
  %v426 = vrsqrt.pop %v410
  %v427 = vrsqrt.pop %v411
  %v428 = vrsqrt.pop %v412
  %v429 = vrsqrt.pop %v413
  %v430 = vrsqrt.pop %v414
  %v431 = vrsqrt.pop %v415
  %v432 = vrsqrt.pop %v416
  %v433 = vrsqrt.pop %v417
  %v434 = vrsqrt.pop %v418
  %v435 = vrsqrt.pop %v419
  %v436 = vrsqrt.pop %v420
  %v437 = vrsqrt.pop %v421
  %v438 = vrsqrt.pop %v422
  %v439 = vmul.f32 %v311, %v423
  %v440 = vmul.f32 %v312, %v424
  %v441 = vmul.f32 %v313, %v425
  %v442 = vmul.f32 %v314, %v426
  %v443 = vmul.f32 %v315, %v427
  %v444 = vmul.f32 %v316, %v428
  %v445 = vmul.f32 %v317, %v429
  %v446 = vmul.f32 %v318, %v430
  %v447 = vmul.f32 %v319, %v431
  %v448 = vmul.f32 %v320, %v432
  %v449 = vmul.f32 %v321, %v433
  %v450 = vmul.f32 %v322, %v434
  %v451 = vmul.f32 %v323, %v435
  %v452 = vmul.f32 %v324, %v436
  %v453 = vmul.f32 %v325, %v437
  %v454 = vmul.f32 %v326, %v438
  %v455 = vlaneseq
  %v456 = vshrl.u32 %v455, 7
  %v457 = vsub.s32 1, %v456
  %v458 = vrot.slane %v47, %v457
  %v459 = vmul.f32 %v439, %v458
  %v460 = vmul.f32 %v440, %v458
  %v461 = vmul.f32 %v441, %v458
  %v462 = vmul.f32 %v442, %v458
  %v463 = vmul.f32 %v443, %v458
  %v464 = vmul.f32 %v444, %v458
  %v465 = vmul.f32 %v445, %v458
  %v466 = vmul.f32 %v446, %v458
  %v467 = vmul.f32 %v447, %v458
  %v468 = vmul.f32 %v448, %v458
  %v469 = vmul.f32 %v449, %v458
  %v470 = vmul.f32 %v450, %v458
  %v471 = vmul.f32 %v451, %v458
  %v472 = vmul.f32 %v452, %v458
  %v473 = vmul.f32 %v453, %v458
  %v474 = vmul.f32 %v454, %v458
  %v475 = vlaneseq
  %v476 = vshrl.u32 %v475, 7
  %v477 = vsub.s32 2, %v476
  %v478 = vrot.slane %v47, %v477
  %v479 = vadd.f32 %v459, %v478
  %v480 = vadd.f32 %v460, %v478
  %v481 = vadd.f32 %v461, %v478
  %v482 = vadd.f32 %v462, %v478
  %v483 = vadd.f32 %v463, %v478
  %v484 = vadd.f32 %v464, %v478
  %v485 = vadd.f32 %v465, %v478
  %v486 = vadd.f32 %v466, %v478
  %v487 = vadd.f32 %v467, %v478
  %v488 = vadd.f32 %v468, %v478
  %v489 = vadd.f32 %v469, %v478
  %v490 = vadd.f32 %v470, %v478
  %v491 = vadd.f32 %v471, %v478
  %v492 = vadd.f32 %v472, %v478
  %v493 = vadd.f32 %v473, %v478
  %v494 = vadd.f32 %v474, %v478
  %495 = vst.msk [vmem:[%s3] sm:$0xff] %vm245, %v479
  %496 = vst.msk [vmem:[%s3 + $0x8] sm:$0xff] %vm245, %v480
  %497 = vst.msk [vmem:[%s3 + $0x10] sm:$0xff] %vm245, %v481
  %498 = vst.msk [vmem:[%s3 + $0x18] sm:$0xff] %vm245, %v482
  %499 = vst.msk [vmem:[%s3 + $0x20] sm:$0xff] %vm245, %v483
  %500 = vst.msk [vmem:[%s3 + $0x28] sm:$0xff] %vm245, %v484
  %501 = vst.msk [vmem:[%s3 + $0x30] sm:$0xff] %vm245, %v485
  %502 = vst.msk [vmem:[%s3 + $0x38] sm:$0xff] %vm245, %v486
  %503 = vst.msk [vmem:[%s3 + $0x40] sm:$0xff] %vm245, %v487
  %504 = vst.msk [vmem:[%s3 + $0x48] sm:$0xff] %vm245, %v488
  %505 = vst.msk [vmem:[%s3 + $0x50] sm:$0xff] %vm245, %v489
  %506 = vst.msk [vmem:[%s3 + $0x58] sm:$0xff] %vm245, %v490
  %507 = vst.msk [vmem:[%s3 + $0x60] sm:$0xff] %vm245, %v491
  %508 = vst.msk [vmem:[%s3 + $0x68] sm:$0xff] %vm245, %v492
  %509 = vst.msk [vmem:[%s3 + $0x70] sm:$0xff] %vm245, %v493
  %510 = vst.msk [vmem:[%s3 + $0x78] sm:$0xff] %vm245, %v494
  // Predicated region
  $region14: #{tpu_custom_call.1} parent=0 // pred_check
    _
  $region15: #{tpu_custom_call.1} parent=0 // pred_check_branch
    %512 = sbr.rel (0) target = $region17
  $region16: #{tpu_custom_call.1} parent=0 // pred_region
    _
  $region17: #{tpu_custom_call.1} parent=0 // pred_fallthru
    _
  // Predicated region
  $region18: #{tpu_custom_call.1} parent=0 // pred_check
    _
  $region19: #{tpu_custom_call.1} parent=0 // pred_check_branch
    %514 = sbr.rel (0) target = $region21
  $region20: #{tpu_custom_call.1} parent=0 // pred_region
    _
  $region21: #{tpu_custom_call.1} parent=0 // pred_fallthru
    _

</llo_original>
